<compile_context>
chip_gen: v5e
topology: v5e:2x2
jax: 0.10.0
libtpu: 0.0.40
codegen_flags: <defaults>
</compile_context>

<pallas_src>
import functools

import jax
import jax.numpy as jnp
from jax.experimental import pallas as pl
from jax.experimental.pallas import tpu as pltpu

_EPS = 1e-5
_LANE = 128
_VMEM_SPEC = pl.BlockSpec(memory_space=pltpu.MemorySpace.VMEM)


# -----------------------------------------------------------------------------
# Shared in-kernel math
# -----------------------------------------------------------------------------
def _bn_relu(lin, gamma, beta):
    """Training-mode BatchNorm1d (biased batch var, eps=1e-5) + ReLU, in f32.

    The residual Linear bias is omitted upstream: it cancels exactly with the
    mean subtraction here.
    """
    mu = jnp.mean(lin, axis=0, keepdims=True)
    d = lin - mu
    var = jnp.mean(d * d, axis=0, keepdims=True)
    return jnp.maximum(gamma * (d * jax.lax.rsqrt(var + _EPS)) + beta, 0.0)


# -----------------------------------------------------------------------------
# Kernel A: split-weight matmuls (feature widths not lane-dense)
# -----------------------------------------------------------------------------
def _generator_kernel_split(*refs, n_blocks, matmul_dtype):
    """refs = (x, [w, gamma, beta] * n_blocks, w_final, b_final, out).

    Activation after block k is the never-materialized concat
    [h_k, ..., h_1, x], kept as a Python list of segments (newest first,
    matching the torch row order of the weights); every Linear is a sum of
    split-weight matmuls.
    """
    x_ref = refs[0]
    blk = refs[1:1 + 3 * n_blocks]
    wf_ref = refs[1 + 3 * n_blocks]
    bf_ref = refs[2 + 3 * n_blocks]
    o_ref = refs[3 + 3 * n_blocks]

    def split_matmul(segs, w_ref):
        acc = None
        row = 0
        for seg in segs:
            width = seg.shape[1]
            part = jnp.dot(
                seg.astype(matmul_dtype),
                w_ref[row:row + width, :].astype(matmul_dtype),
                preferred_element_type=jnp.float32,
            )
            acc = part if acc is None else acc + part
            row += width
        return acc

    segs = [x_ref[...]]
    for k in range(n_blocks):
        w_ref = blk[3 * k]
        gamma = blk[3 * k + 1][...]
        beta = blk[3 * k + 2][...]
        lin = split_matmul(segs, w_ref)
        segs.insert(0, _bn_relu(lin, gamma, beta))

    o_ref[...] = split_matmul(segs, wf_ref) + bf_ref[...]


# -----------------------------------------------------------------------------
# Kernel B: single append-ordered VMEM activation buffer (lane-dense widths)
# -----------------------------------------------------------------------------
def _generator_kernel_dense(*refs, widths, matmul_dtype):
    """refs = (x, [w, gamma, beta]*n_blocks, w_final, b_final, out, act_scratch).

    widths = (d0, item_1, ..., item_n), all multiples of 128 so every lane
    offset in the activation scratch is aligned (unmasked stores). Weight rows
    were permuted at prep time to the append order [x, h1, ..., h_{k-1}], so
    each layer is ONE MXU dot over the prefix slice of the scratch buffer.
    """
    n_blocks = len(widths) - 1
    x_ref = refs[0]
    blk = refs[1:1 + 3 * n_blocks]
    wf_ref = refs[1 + 3 * n_blocks]
    bf_ref = refs[2 + 3 * n_blocks]
    o_ref = refs[3 + 3 * n_blocks]
    act_ref = refs[4 + 3 * n_blocks]

    d0 = widths[0]
    act_ref[:, :d0] = x_ref[...]
    off = d0
    for k in range(n_blocks):
        w_ref = blk[3 * k]
        gamma = blk[3 * k + 1][...]
        beta = blk[3 * k + 2][...]
        item = widths[k + 1]
        lin = jnp.dot(
            act_ref[:, :off].astype(matmul_dtype),
            w_ref[...].astype(matmul_dtype),
            preferred_element_type=jnp.float32,
        )
        act_ref[:, off:off + item] = _bn_relu(lin, gamma, beta)
        off += item

    o_ref[...] = jnp.dot(
        act_ref[...].astype(matmul_dtype),
        wf_ref[...].astype(matmul_dtype),
        preferred_element_type=jnp.float32,
    ) + bf_ref[...]


# -----------------------------------------------------------------------------
# One-time parameter prep (OUTSIDE the per-call path)
# -----------------------------------------------------------------------------
def _is_lane_dense(d0, items):
    return (d0 % _LANE == 0) and all(it % _LANE == 0 for it in items)


def prepare_params(params):
    """Drop residual biases (exact under training BN), permute weight rows to
    append order for the lane-dense path, and zero-pad the final Linear to a
    lane-dense output width. Run once; the result is fed to the jitted forward.
    """
    blocks = params["residuals"]
    d0 = blocks[0][0].shape[0]
    items = tuple(w.shape[1] for (w, _b, _g, _bt) in blocks)
    dense = _is_lane_dense(d0, items)

    def to_append_order(w, k_segments_newest_first):
        # torch row order (top->bottom): [h_{k-1}, ..., h_1, x]
        segs, row = [], 0
        for s in k_segments_newest_first:
            segs.append(w[row:row + s, :])
            row += s
        return jnp.concatenate(segs[::-1], axis=0)  # -> [x, h_1, ..., h_{k-1}]

    prepped_blocks = []
    for k, (w, _b, gamma, beta) in enumerate(blocks):
        if dense and k > 0:
            w = to_append_order(w, list(items[:k][::-1]) + [d0])
        prepped_blocks.append((w, gamma, beta))

    wf = params["final_w"]
    bf = params["final_b"]
    if dense:
        wf = to_append_order(wf, list(items[::-1]) + [d0])

    data_dim = wf.shape[1]
    data_dim_p = ((data_dim + _LANE - 1) // _LANE) * _LANE
    if data_dim_p != data_dim:
        wf = jnp.pad(wf, ((0, 0), (0, data_dim_p - data_dim)))
        bf = jnp.pad(bf, ((0, 0), (0, data_dim_p - data_dim)))

    return {"blocks": prepped_blocks, "final_w": wf, "final_b": bf}


# -----------------------------------------------------------------------------
# Jitted wrapper: one pallas_call for the whole generator
# -----------------------------------------------------------------------------
def _nbytes(shape, itemsize=4):
    n = itemsize
    for d in shape:
        n *= d
    return n


@functools.partial(jax.jit, static_argnames=("data_dim", "use_bf16"))
def generator_forward(prepped, x, *, data_dim, use_bf16=False):
    blocks = prepped["blocks"]
    n_blocks = len(blocks)
    batch, d0 = x.shape
    items = tuple(w.shape[1] for (w, _g, _b) in blocks)
    widths = (d0,) + items
    dense = _is_lane_dense(d0, items)
    data_dim_p = prepped["final_w"].shape[1]
    matmul_dtype = jnp.bfloat16 if use_bf16 else jnp.float32

    args = [x]
    for (w, g, b) in blocks:
        args += [w, g, b]
    args += [prepped["final_w"], prepped["final_b"]]

    # Explicit VMEM budget: everything (weights + activations + scratch) is
    # resident in one invocation; 2x headroom for compiler temporaries, capped
    # at 64 MiB (v7x physical per-TC VMEM).
    total = sum(_nbytes(a.shape) for a in args) + _nbytes((batch, data_dim_p))
    if dense:
        total += _nbytes((batch, sum(widths)))
    vmem_limit = int(min(max(2 * total, 16 << 20), 64 << 20))

    if dense:
        kernel = functools.partial(
            _generator_kernel_dense, widths=widths, matmul_dtype=matmul_dtype)
        scratch = [pltpu.VMEM((batch, sum(widths)), jnp.float32)]
    else:
        kernel = functools.partial(
            _generator_kernel_split, n_blocks=n_blocks, matmul_dtype=matmul_dtype)
        scratch = []

    out = pl.pallas_call(
        kernel,
        out_shape=jax.ShapeDtypeStruct((batch, data_dim_p), jnp.float32),
        in_specs=[_VMEM_SPEC] * len(args),
        out_specs=_VMEM_SPEC,
        scratch_shapes=scratch,
        compiler_params=pltpu.CompilerParams(vmem_limit_bytes=vmem_limit),
    )(*args)
    return out[:, :data_dim]


# -----------------------------------------------------------------------------
# Parameter construction (shapes matching the PyTorch module)
# -----------------------------------------------------------------------------
def init_generator_params(key, embedding_dim, generator_dim, data_dim):
    """Residual(i, o): Linear weight (i, o) [pre-transposed], bias (1, o),
    BN gamma (1, o) = 1, BN beta (1, o) = 0.
    Final Linear(dim, data_dim): weight (dim, data_dim), bias (1, data_dim)."""
    params = {"residuals": []}
    dim = embedding_dim
    for item in generator_dim:
        key, kw, kb = jax.random.split(key, 3)
        bound = 1.0 / jnp.sqrt(dim)
        w = jax.random.uniform(kw, (dim, item), jnp.float32, -bound, bound)
        b = jax.random.uniform(kb, (1, item), jnp.float32, -bound, bound)
        gamma = jnp.ones((1, item), jnp.float32)
        beta = jnp.zeros((1, item), jnp.float32)
        params["residuals"].append((w, b, gamma, beta))
        dim += item
    key, kw, kb = jax.random.split(key, 3)
    bound = 1.0 / jnp.sqrt(dim)
    params["final_w"] = jax.random.uniform(
        kw, (dim, data_dim), jnp.float32, -bound, bound)
    params["final_b"] = jax.random.uniform(
        kb, (1, data_dim), jnp.float32, -bound, bound)
    return params


# -----------------------------------------------------------------------------
# Pure-JAX reference (PyTorch-faithful: includes the residual Linear bias,
# torch-order weights)
# -----------------------------------------------------------------------------
def generator_reference(params, x):
    h = x
    for (w, b, gamma, beta) in params["residuals"]:
        lin = h @ w + b
        mu = jnp.mean(lin, axis=0, keepdims=True)
        var = jnp.mean((lin - mu) ** 2, axis=0, keepdims=True)
        bn = gamma * (lin - mu) / jnp.sqrt(var + _EPS) + beta
        h = jnp.concatenate([jnp.maximum(bn, 0.0), h], axis=1)
    return h @ params["final_w"] + params["final_b"]


# -----------------------------------------------------------------------------
# Test harness
# -----------------------------------------------------------------------------
def _run_case(key, embedding_dim, generator_dim, data_dim, batch):
    key, kx = jax.random.split(key)
    x = jax.random.normal(kx, (batch, embedding_dim), jnp.float32)
    params = init_generator_params(key, embedding_dim, generator_dim, data_dim)
    prepped = prepare_params(params)

    out = generator_forward(prepped, x, data_dim=data_dim)
    out = jax.block_until_ready(out)

    ref = generator_reference(params, x)
    assert out.shape == (batch, data_dim), out.shape
    err = float(jnp.max(jnp.abs(out - ref)))
    assert jnp.allclose(out, ref, atol=1e-4, rtol=1e-4), err


if __name__ == "__main__":
    key = jax.random.PRNGKey(0)
    k1, k2 = jax.random.split(key)

    # Toy CTGAN-like shapes (non-lane-dense -> split-matmul path).
    _run_case(k1, embedding_dim=32, generator_dim=(32, 32), data_dim=16, batch=8)

    # Small lane-dense shapes (multiples of 128 -> single-dot-per-layer path
    # with an append-ordered VMEM activation scratch, as used at realistic
    # CTGAN dims 128/256/512).
    _run_case(k2, embedding_dim=128, generator_dim=(128, 128), data_dim=64, batch=16)

    print("KERNEL_OK")
</pallas_src>

<mosaic_0001>
module attributes {stable_mosaic.version = 11 : i64} {
  func.func @_generator_kernel_split(%arg0: memref<8x32xf32, #tpu.memory_space<vmem>>, %arg1: memref<32x32xf32, #tpu.memory_space<vmem>>, %arg2: memref<1x32xf32, #tpu.memory_space<vmem>>, %arg3: memref<1x32xf32, #tpu.memory_space<vmem>>, %arg4: memref<64x32xf32, #tpu.memory_space<vmem>>, %arg5: memref<1x32xf32, #tpu.memory_space<vmem>>, %arg6: memref<1x32xf32, #tpu.memory_space<vmem>>, %arg7: memref<96x128xf32, #tpu.memory_space<vmem>>, %arg8: memref<1x128xf32, #tpu.memory_space<vmem>>, %arg9: memref<8x128xf32, #tpu.memory_space<vmem>>) attributes {dimension_semantics = [], scalar_prefetch = 0 : i64, scratch_operands = 0 : i64, tpu.core_type = #tpu.core_type<tc>} {
    %c0 = arith.constant 0 : index
    %c0_0 = arith.constant 0 : index
    %0 = vector.load %arg0[%c0, %c0_0] : memref<8x32xf32, #tpu.memory_space<vmem>>, vector<8x32xf32>
    %c0_1 = arith.constant 0 : index
    %c0_2 = arith.constant 0 : index
    %1 = vector.load %arg2[%c0_1, %c0_2] : memref<1x32xf32, #tpu.memory_space<vmem>>, vector<1x32xf32>
    %c0_3 = arith.constant 0 : index
    %c0_4 = arith.constant 0 : index
    %2 = vector.load %arg3[%c0_3, %c0_4] : memref<1x32xf32, #tpu.memory_space<vmem>>, vector<1x32xf32>
    %c0_5 = arith.constant 0 : index
    %c0_6 = arith.constant 0 : index
    %3 = vector.load %arg1[%c0_5, %c0_6] : memref<32x32xf32, #tpu.memory_space<vmem>>, vector<32x32xf32>
    %cst = arith.constant dense<0.000000e+00> : vector<8x32xf32>
    %4 = tpu.matmul %0, %3, %cst {dimension_numbers = #tpu.dot_dimension_numbers<[1], [0], [0], [1], [0, 0, 1, 1], [], []>} : vector<8x32xf32>, vector<32x32xf32>, vector<8x32xf32> -> vector<8x32xf32>
    %cst_7 = arith.constant dense<0.000000e+00> : vector<32xf32>
    %5 = vector.multi_reduction <add>, %4, %cst_7 [0] : vector<8x32xf32> to vector<32xf32>
    %6 = vector.shape_cast %5 : vector<32xf32> to vector<1x32xf32>
    %cst_8 = arith.constant 8.000000e+00 : f32
    %7 = vector.broadcast %cst_8 : f32 to vector<1x32xf32>
    %8 = arith.divf %6, %7 : vector<1x32xf32>
    %9 = vector.broadcast %8 : vector<1x32xf32> to vector<8x32xf32>
    %10 = arith.subf %4, %9 : vector<8x32xf32>
    %11 = arith.mulf %10, %10 : vector<8x32xf32>
    %cst_9 = arith.constant dense<0.000000e+00> : vector<32xf32>
    %12 = vector.multi_reduction <add>, %11, %cst_9 [0] : vector<8x32xf32> to vector<32xf32>
    %13 = vector.shape_cast %12 : vector<32xf32> to vector<1x32xf32>
    %cst_10 = arith.constant 8.000000e+00 : f32
    %14 = vector.broadcast %cst_10 : f32 to vector<1x32xf32>
    %15 = arith.divf %13, %14 : vector<1x32xf32>
    %cst_11 = arith.constant 9.99999974E-6 : f32
    %16 = vector.broadcast %cst_11 : f32 to vector<1x32xf32>
    %17 = arith.addf %15, %16 : vector<1x32xf32>
    %18 = math.rsqrt %17 : vector<1x32xf32>
    %19 = vector.broadcast %18 : vector<1x32xf32> to vector<8x32xf32>
    %20 = arith.mulf %10, %19 : vector<8x32xf32>
    %21 = vector.broadcast %1 : vector<1x32xf32> to vector<8x32xf32>
    %22 = arith.mulf %21, %20 : vector<8x32xf32>
    %23 = vector.broadcast %2 : vector<1x32xf32> to vector<8x32xf32>
    %24 = arith.addf %22, %23 : vector<8x32xf32>
    %cst_12 = arith.constant 0.000000e+00 : f32
    %25 = vector.broadcast %cst_12 : f32 to vector<8x32xf32>
    %26 = arith.maximumf %24, %25 : vector<8x32xf32>
    %c0_13 = arith.constant 0 : index
    %c0_14 = arith.constant 0 : index
    %27 = vector.load %arg5[%c0_13, %c0_14] : memref<1x32xf32, #tpu.memory_space<vmem>>, vector<1x32xf32>
    %c0_15 = arith.constant 0 : index
    %c0_16 = arith.constant 0 : index
    %28 = vector.load %arg6[%c0_15, %c0_16] : memref<1x32xf32, #tpu.memory_space<vmem>>, vector<1x32xf32>
    %c0_17 = arith.constant 0 : index
    %c0_18 = arith.constant 0 : index
    %29 = vector.load %arg4[%c0_17, %c0_18] : memref<64x32xf32, #tpu.memory_space<vmem>>, vector<32x32xf32>
    %cst_19 = arith.constant dense<0.000000e+00> : vector<8x32xf32>
    %30 = tpu.matmul %26, %29, %cst_19 {dimension_numbers = #tpu.dot_dimension_numbers<[1], [0], [0], [1], [0, 0, 1, 1], [], []>} : vector<8x32xf32>, vector<32x32xf32>, vector<8x32xf32> -> vector<8x32xf32>
    %c32 = arith.constant 32 : index
    %c0_20 = arith.constant 0 : index
    %31 = vector.load %arg4[%c32, %c0_20] : memref<64x32xf32, #tpu.memory_space<vmem>>, vector<32x32xf32>
    %cst_21 = arith.constant dense<0.000000e+00> : vector<8x32xf32>
    %32 = tpu.matmul %0, %31, %cst_21 {dimension_numbers = #tpu.dot_dimension_numbers<[1], [0], [0], [1], [0, 0, 1, 1], [], []>} : vector<8x32xf32>, vector<32x32xf32>, vector<8x32xf32> -> vector<8x32xf32>
    %33 = arith.addf %30, %32 : vector<8x32xf32>
    %cst_22 = arith.constant dense<0.000000e+00> : vector<32xf32>
    %34 = vector.multi_reduction <add>, %33, %cst_22 [0] : vector<8x32xf32> to vector<32xf32>
    %35 = vector.shape_cast %34 : vector<32xf32> to vector<1x32xf32>
    %cst_23 = arith.constant 8.000000e+00 : f32
    %36 = vector.broadcast %cst_23 : f32 to vector<1x32xf32>
    %37 = arith.divf %35, %36 : vector<1x32xf32>
    %38 = vector.broadcast %37 : vector<1x32xf32> to vector<8x32xf32>
    %39 = arith.subf %33, %38 : vector<8x32xf32>
    %40 = arith.mulf %39, %39 : vector<8x32xf32>
    %cst_24 = arith.constant dense<0.000000e+00> : vector<32xf32>
    %41 = vector.multi_reduction <add>, %40, %cst_24 [0] : vector<8x32xf32> to vector<32xf32>
    %42 = vector.shape_cast %41 : vector<32xf32> to vector<1x32xf32>
    %cst_25 = arith.constant 8.000000e+00 : f32
    %43 = vector.broadcast %cst_25 : f32 to vector<1x32xf32>
    %44 = arith.divf %42, %43 : vector<1x32xf32>
    %cst_26 = arith.constant 9.99999974E-6 : f32
    %45 = vector.broadcast %cst_26 : f32 to vector<1x32xf32>
    %46 = arith.addf %44, %45 : vector<1x32xf32>
    %47 = math.rsqrt %46 : vector<1x32xf32>
    %48 = vector.broadcast %47 : vector<1x32xf32> to vector<8x32xf32>
    %49 = arith.mulf %39, %48 : vector<8x32xf32>
    %50 = vector.broadcast %27 : vector<1x32xf32> to vector<8x32xf32>
    %51 = arith.mulf %50, %49 : vector<8x32xf32>
    %52 = vector.broadcast %28 : vector<1x32xf32> to vector<8x32xf32>
    %53 = arith.addf %51, %52 : vector<8x32xf32>
    %cst_27 = arith.constant 0.000000e+00 : f32
    %54 = vector.broadcast %cst_27 : f32 to vector<8x32xf32>
    %55 = arith.maximumf %53, %54 : vector<8x32xf32>
    %c0_28 = arith.constant 0 : index
    %c0_29 = arith.constant 0 : index
    %56 = vector.load %arg7[%c0_28, %c0_29] : memref<96x128xf32, #tpu.memory_space<vmem>>, vector<32x128xf32>
    %cst_30 = arith.constant dense<0.000000e+00> : vector<8x128xf32>
    %57 = tpu.matmul %55, %56, %cst_30 {dimension_numbers = #tpu.dot_dimension_numbers<[1], [0], [0], [1], [0, 0, 1, 1], [], []>} : vector<8x32xf32>, vector<32x128xf32>, vector<8x128xf32> -> vector<8x128xf32>
    %c32_31 = arith.constant 32 : index
    %c0_32 = arith.constant 0 : index
    %58 = vector.load %arg7[%c32_31, %c0_32] : memref<96x128xf32, #tpu.memory_space<vmem>>, vector<32x128xf32>
    %cst_33 = arith.constant dense<0.000000e+00> : vector<8x128xf32>
    %59 = tpu.matmul %26, %58, %cst_33 {dimension_numbers = #tpu.dot_dimension_numbers<[1], [0], [0], [1], [0, 0, 1, 1], [], []>} : vector<8x32xf32>, vector<32x128xf32>, vector<8x128xf32> -> vector<8x128xf32>
    %60 = arith.addf %57, %59 : vector<8x128xf32>
    %c64 = arith.constant 64 : index
    %c0_34 = arith.constant 0 : index
    %61 = vector.load %arg7[%c64, %c0_34] : memref<96x128xf32, #tpu.memory_space<vmem>>, vector<32x128xf32>
    %cst_35 = arith.constant dense<0.000000e+00> : vector<8x128xf32>
    %62 = tpu.matmul %0, %61, %cst_35 {dimension_numbers = #tpu.dot_dimension_numbers<[1], [0], [0], [1], [0, 0, 1, 1], [], []>} : vector<8x32xf32>, vector<32x128xf32>, vector<8x128xf32> -> vector<8x128xf32>
    %63 = arith.addf %60, %62 : vector<8x128xf32>
    %c0_36 = arith.constant 0 : index
    %c0_37 = arith.constant 0 : index
    %64 = vector.load %arg8[%c0_36, %c0_37] : memref<1x128xf32, #tpu.memory_space<vmem>>, vector<1x128xf32>
    %65 = vector.broadcast %64 : vector<1x128xf32> to vector<8x128xf32>
    %66 = arith.addf %63, %65 : vector<8x128xf32>
    %c0_38 = arith.constant 0 : index
    %c0_39 = arith.constant 0 : index
    %67 = vector.load %arg9[%c0_38, %c0_39] : memref<8x128xf32, #tpu.memory_space<vmem>>, vector<8x128xf32>
    tpu.vector_store %arg9[%c0_38, %c0_39], %66 {strides = array<i32>} : memref<8x128xf32, #tpu.memory_space<vmem>>, vector<8x128xf32>,
    return
  }
}

</mosaic_0001>

<llo_original>
// kernel: generator_forward.1
$region0: #{generator_forward.1}
  #allocation0 [shape = 'u32[]', space=smem, size = 0x4, offset = 0x4, fixed_abs, tag = 'smem constant byte address 0x4 - core index']
  #allocation1 [shape = 'u32[72,128]{1,0:T(1,128)}', space=vmem, size = 0x9000, scoped, tag = 'internal scratch']
  %s0 = inlined_call_operand.hbm [shape: f32[8,32], index: 0, kind: input, shape index: {}]
  %s1 = inlined_call_operand.hbm [shape: f32[32,32], index: 1, kind: input, shape index: {}]
  %s2 = inlined_call_operand.vmem [shape: f32[1,32], index: 2, kind: input, shape index: {}]
  %s3 = inlined_call_operand.vmem [shape: f32[1,32], index: 3, kind: input, shape index: {}]
  %s4 = inlined_call_operand.vmem [shape: f32[64,32], index: 4, kind: input, shape index: {}]
  %s5 = inlined_call_operand.vmem [shape: f32[1,32], index: 5, kind: input, shape index: {}]
  %s6 = inlined_call_operand.vmem [shape: f32[1,32], index: 6, kind: input, shape index: {}]
  %s7 = inlined_call_operand.vmem [shape: f32[96,128], index: 7, kind: input, shape index: {}]
  %s8 = inlined_call_operand.vmem [shape: f32[1,128], index: 8, kind: input, shape index: {}]
  %s9 = inlined_call_operand.hbm [shape: f32[8,128], index: 9, kind: output, shape index: {}]
  %s10 = sld [smem:[#allocation0]]
  $region54: #{generator_forward.1} parent=0
    _
  %s12 = ssub.s32 1, %s10
  %s13 = scalar_select 0, %s12, %s10
  $region1: #{generator_forward.1} parent=0
    #allocation2 [shape = 'u8[4096]{0}', space=vmem, size = 0x1000, scoped, tag = 'input window, operand 0, single buffered']
    #allocation3 [shape = 's32[1]{0}', space=sflag, size = 0x4, scoped, tag = 'scoped memory for generator_forward.1']
    #allocation4 [shape = 's32[1]{0}', space=sflag, size = 0x4, scoped, tag = 'scoped memory for generator_forward.1']
    #allocation5 [shape = 'u8[16384]{0}', space=vmem, size = 0x4000, scoped, tag = 'input window, operand 1, single buffered']
    #allocation6 [shape = 's32[1]{0}', space=sflag, size = 0x4, scoped, tag = 'scoped memory for generator_forward.1']
    #allocation7 [shape = 'u8[4096]{0}', space=vmem, size = 0x1000, scoped, tag = 'output window, operand 0, single buffered']
    %14 = vsyncpa [#allocation3], 0
    %15 = vsyncpa [#allocation6], 0
    %16 = vsyncpa [#allocation4], 0
    // Predicated region
    $region2: #{generator_forward.1} parent=1 // pred_check
      _
    $region3: #{generator_forward.1} parent=1 // pred_check_branch
      %18 = sbr.rel (0) target = $region5
    $region4: #{generator_forward.1} parent=1 // pred_region
      %20 = vsyncadd [#allocation3], 0
      %s22 = sshll.u32 %s0, 4
      %s23 = int_to_ptr.hbm [resolvable:$true] %s22
      %s24 = sshll.u32 [#allocation2], 4
      %s25 = int_to_ptr.vmem [resolvable:$true] %s24
      %27 = dma.hbm_to_vmem [thread:$0]  %s23, 128, %s25, [#allocation3]
    $region5: #{generator_forward.1} parent=1 // pred_fallthru
      _
    // Predicated region
    $region6: #{generator_forward.1} parent=1 // pred_check
      _
    $region7: #{generator_forward.1} parent=1 // pred_check_branch
      %29 = sbr.rel (0) target = $region9
    $region8: #{generator_forward.1} parent=1 // pred_region
      %31 = vsyncadd [#allocation6], 0
      %s32 = sshll.u32 %s1, 4
      %s33 = int_to_ptr.hbm [resolvable:$true] %s32
      %s34 = sshll.u32 [#allocation5], 4
      %s35 = int_to_ptr.vmem [resolvable:$true] %s34
      %40 = dma.hbm_to_vmem [thread:$0]  %s33, 512, %s35, [#allocation6], 128, 128, 8
    $region9: #{generator_forward.1} parent=1 // pred_fallthru
      _
    // Predicated region
    $region10: #{generator_forward.1} parent=1 // pred_check
      _
    $region11: #{generator_forward.1} parent=1 // pred_check_branch
      %42 = sbr.rel (0) target = $region13
    $region12: #{generator_forward.1} parent=1 // pred_region
      _
    $region13: #{generator_forward.1} parent=1 // pred_fallthru
      _
    // Predicated region
    $region14: #{generator_forward.1} parent=1 // pred_check
      _
    $region15: #{generator_forward.1} parent=1 // pred_check_branch
      %44 = sbr.rel (0) target = $region17
    $region16: #{generator_forward.1} parent=1 // pred_region
      _
    $region17: #{generator_forward.1} parent=1 // pred_fallthru
      _
    // Predicated region
    $region18: #{generator_forward.1} parent=1 // pred_check
      _
    $region19: #{generator_forward.1} parent=1 // pred_check_branch
      %46 = sbr.rel (0) target = $region21
    $region20: #{generator_forward.1} parent=1 // pred_region
      _
    $region21: #{generator_forward.1} parent=1 // pred_fallthru
      _
    // Predicated region
    $region22: #{generator_forward.1} parent=1 // pred_check
      _
    $region23: #{generator_forward.1} parent=1 // pred_check_branch
      %48 = sbr.rel (0) target = $region25
    $region24: #{generator_forward.1} parent=1 // pred_region
      _
    $region25: #{generator_forward.1} parent=1 // pred_fallthru
      _
    // Predicated region
    $region26: #{generator_forward.1} parent=1 // pred_check
      _
    $region27: #{generator_forward.1} parent=1 // pred_check_branch
      %50 = sbr.rel (0) target = $region29
    $region28: #{generator_forward.1} parent=1 // pred_region
      _
    $region29: #{generator_forward.1} parent=1 // pred_fallthru
      _
    // Predicated region
    $region30: #{generator_forward.1} parent=1 // pred_check
      _
    $region31: #{generator_forward.1} parent=1 // pred_check_branch
      %52 = sbr.rel (0) target = $region33
    $region32: #{generator_forward.1} parent=1 // pred_region
      _
    $region33: #{generator_forward.1} parent=1 // pred_fallthru
      _
    // Predicated region
    $region34: #{generator_forward.1} parent=1 // pred_check
      _
    $region35: #{generator_forward.1} parent=1 // pred_check_branch
      %54 = sbr.rel (0) target = $region37
    $region36: #{generator_forward.1} parent=1 // pred_region
      _
    $region37: #{generator_forward.1} parent=1 // pred_fallthru
      _
    // Predicated region
    $region38: #{generator_forward.1} parent=1 // pred_check
      _
    $region39: #{generator_forward.1} parent=1 // pred_check_branch
      %56 = sbr.rel (0) target = $region41
    $region40: #{generator_forward.1} parent=1 // pred_region
      %58 = dma.done [#allocation3], 128
    $region41: #{generator_forward.1} parent=1 // pred_fallthru
      _
    // Predicated region
    $region42: #{generator_forward.1} parent=1 // pred_check
      _
    $region43: #{generator_forward.1} parent=1 // pred_check_branch
      %60 = sbr.rel (0) target = $region45
    $region44: #{generator_forward.1} parent=1 // pred_region
      %62 = dma.done [#allocation6], 512
    $region45: #{generator_forward.1} parent=1 // pred_fallthru
      _
    %v63 = vld [vmem:[#allocation2] sm:$0xff]
    %v64 = vld [vmem:[%s2] sm:$0x1]
    %v65 = vld [vmem:[%s3] sm:$0x1]
    %v66 = vld [vmem:[#allocation5] sm:$0xff]
    %v67 = vld [vmem:[#allocation5 + $0x8] sm:$0xff]
    %v68 = vld [vmem:[#allocation5 + $0x10] sm:$0xff]
    %v69 = vld [vmem:[#allocation5 + $0x18] sm:$0xff]
    %vm70 = vcmask 261120
    %v72 = vsel %vm70, %v63, 0
    %74 = vmatpush.msra.mxu0 0.0
    %75 = vmatpush.msra.mxu0 0.0
    %76 = vmatpush.msra.mxu0 0.0
    %77 = vmatpush.msra.mxu0 0.0
    %78 = vmatpush.msra.mxu0 0.0
    %79 = vmatpush.msra.mxu0 0.0
    %80 = vmatpush.msra.mxu0 0.0
    %81 = vmatpush.msra.mxu0 0.0
    %82 = vmatpush.msra.mxu0 0.0
    %83 = vmatpush.msra.mxu0 0.0
    %84 = vmatpush.msra.mxu0 0.0
    %85 = vmatpush.msra.mxu0 0.0
    %86 = vmatpush.msra.mxu0 %v69
    %87 = vmatpush.msra.mxu0 %v68
    %88 = vmatpush.msra.mxu0 %v67
    %89 = vmatpush.msra.mxu0 %v66
    %90 = vmatmul.f32.gmra.mxu0 %v72
    %v91 = vpop.f32.mrf.mxu0
    %v92 = vadd.f32 0.0, %v91
    %93 = vdwg.mxu0
    %v94 = vsel %vm70, %v92, 0.0
    %v95 = vrot.slane %v94, 4
    %v96 = vadd.f32 %v94, %v95
    %v97 = vrot.slane %v96, 2
    %v98 = vadd.f32 %v96, %v97
    %v99 = vrot.slane %v98, 1
    %v100 = vadd.f32 %v98, %v99
    %v101 = vrcp.pop 8.0
    %v102 = vmul.f32 8.0, %v101
    %v103 = vsub.f32 1.0, %v102
    %v104 = vmul.f32 %v101, %v103
    %v105 = vadd.f32 %v101, %v104
    %vm106 = vweird.f32 %v101
    %v107 = vsel %vm106, %v101, %v105
    %v108 = vmul.f32 %v100, %v107
    %v109 = vsub.f32 %v92, %v108
    %v110 = vmul.f32 %v109, %v109
    %v111 = vsel %vm70, %v110, 0.0
    %v112 = vrot.slane %v111, 4
    %v113 = vadd.f32 %v111, %v112
    %v114 = vrot.slane %v113, 2
    %v115 = vadd.f32 %v113, %v114
    %v116 = vrot.slane %v115, 1
    %v117 = vadd.f32 %v115, %v116
    %v118 = vmul.f32 %v117, %v107
    %v119 = vadd.f32 %v118, 1e-05
    %v120 = vrsqrt.pop %v119
    %v121 = vmul.f32 %v120, %v119
    %v122 = vmul.f32 %v121, %v120
    %v123 = vmul.f32 0.5, %v122
    %v124 = vsub.f32 1.5, %v123
    %v125 = vmul.f32 %v120, %v124
    %vm126 = vweird.f32 %v119
    %vm127 = vweird.f32 %v120
    %vm128 = vmor %vm126, %vm127
    %v129 = vsel %vm128, %v120, %v125
    %v130 = vmul.f32 %v109, %v129
    %v132 = vperm.slane %v64, 0
    %v134 = vmul.f32 %v132, %v130
    %v136 = vperm.slane %v65, 0
    %v138 = vadd.f32 %v134, %v136
    %v139 = vmax.f32 %v138, 0.0
    %v140 = vld [vmem:[%s5] sm:$0x1]
    %v141 = vld [vmem:[%s6] sm:$0x1]
    %v142 = vld [vmem:[%s4] sm:$0xff]
    %v143 = vld [vmem:[%s4 + $0x8] sm:$0xff]
    %v144 = vld [vmem:[%s4 + $0x10] sm:$0xff]
    %v145 = vld [vmem:[%s4 + $0x18] sm:$0xff]
    %v146 = vld [vmem:[%s4 + $0x20] sm:$0xff]
    %v147 = vld [vmem:[%s4 + $0x28] sm:$0xff]
    %v148 = vld [vmem:[%s4 + $0x30] sm:$0xff]
    %v149 = vld [vmem:[%s4 + $0x38] sm:$0xff]
    %150 = vmatpush.msra.mxu0 0.0
    %151 = vmatpush.msra.mxu0 0.0
    %152 = vmatpush.msra.mxu0 0.0
    %153 = vmatpush.msra.mxu0 0.0
    %154 = vmatpush.msra.mxu0 0.0
    %155 = vmatpush.msra.mxu0 0.0
    %156 = vmatpush.msra.mxu0 0.0
    %157 = vmatpush.msra.mxu0 0.0
    %158 = vmatpush.msra.mxu0 0.0
    %159 = vmatpush.msra.mxu0 0.0
    %160 = vmatpush.msra.mxu0 0.0
    %161 = vmatpush.msra.mxu0 0.0
    %162 = vmatpush.msra.mxu0 %v149
    %163 = vmatpush.msra.mxu0 %v148
    %164 = vmatpush.msra.mxu0 %v147
    %165 = vmatpush.msra.mxu0 %v146
    %166 = vmatmul.f32.gmra.mxu0 %v72
    %v167 = vpop.f32.mrf.mxu0
    %v168 = vadd.f32 0.0, %v167
    %169 = vdwg.mxu0
    %v171 = vsel %vm70, %v139, 0
    %173 = vmatpush.msra.mxu0 0.0
    %174 = vmatpush.msra.mxu0 0.0
    %175 = vmatpush.msra.mxu0 0.0
    %176 = vmatpush.msra.mxu0 0.0
    %177 = vmatpush.msra.mxu0 0.0
    %178 = vmatpush.msra.mxu0 0.0
    %179 = vmatpush.msra.mxu0 0.0
    %180 = vmatpush.msra.mxu0 0.0
    %181 = vmatpush.msra.mxu0 0.0
    %182 = vmatpush.msra.mxu0 0.0
    %183 = vmatpush.msra.mxu0 0.0
    %184 = vmatpush.msra.mxu0 0.0
    %185 = vmatpush.msra.mxu0 %v145
    %186 = vmatpush.msra.mxu0 %v144
    %187 = vmatpush.msra.mxu0 %v143
    %188 = vmatpush.msra.mxu0 %v142
    %189 = vmatmul.f32.gmra.mxu0 %v171
    %v190 = vpop.f32.mrf.mxu0
    %v191 = vadd.f32 %v168, %v190
    %192 = vdwg.mxu0
    %v193 = vsel %vm70, %v191, 0.0
    %v194 = vrot.slane %v193, 4
    %v195 = vadd.f32 %v193, %v194
    %v196 = vrot.slane %v195, 2
    %v197 = vadd.f32 %v195, %v196
    %v198 = vrot.slane %v197, 1
    %v199 = vadd.f32 %v197, %v198
    %v200 = vmul.f32 %v199, %v107
    %v201 = vsub.f32 %v191, %v200
    %v202 = vmul.f32 %v201, %v201
    %v203 = vsel %vm70, %v202, 0.0
    %v204 = vrot.slane %v203, 4
    %v205 = vadd.f32 %v203, %v204
    %v206 = vrot.slane %v205, 2
    %v207 = vadd.f32 %v205, %v206
    %v208 = vrot.slane %v207, 1
    %v209 = vadd.f32 %v207, %v208
    %v210 = vmul.f32 %v209, %v107
    %v211 = vadd.f32 %v210, 1e-05
    %v212 = vrsqrt.pop %v211
    %v213 = vmul.f32 %v212, %v211
    %v214 = vmul.f32 %v213, %v212
    %v215 = vmul.f32 0.5, %v214
    %v216 = vsub.f32 1.5, %v215
    %v217 = vmul.f32 %v212, %v216
    %vm218 = vweird.f32 %v211
    %vm219 = vweird.f32 %v212
    %vm220 = vmor %vm218, %vm219
    %v221 = vsel %vm220, %v212, %v217
    %v222 = vmul.f32 %v201, %v221
    %v224 = vperm.slane %v140, 0
    %v226 = vmul.f32 %v224, %v222
    %v228 = vperm.slane %v141, 0
    %v230 = vadd.f32 %v226, %v228
    %v231 = vmax.f32 %v230, 0.0
    %v232 = vld [vmem:[%s7] sm:$0xff]
    %v233 = vld [vmem:[%s7 + $0x8] sm:$0xff]
    %v234 = vld [vmem:[%s7 + $0x10] sm:$0xff]
    %v235 = vld [vmem:[%s7 + $0x18] sm:$0xff]
    %v236 = vld [vmem:[%s7 + $0x20] sm:$0xff]
    %v237 = vld [vmem:[%s7 + $0x28] sm:$0xff]
    %v238 = vld [vmem:[%s7 + $0x30] sm:$0xff]
    %v239 = vld [vmem:[%s7 + $0x38] sm:$0xff]
    %240 = vmatpush.msra.mxu0 0.0
    %241 = vmatpush.msra.mxu0 0.0
    %242 = vmatpush.msra.mxu0 0.0
    %243 = vmatpush.msra.mxu0 0.0
    %244 = vmatpush.msra.mxu0 0.0
    %245 = vmatpush.msra.mxu0 0.0
    %246 = vmatpush.msra.mxu0 0.0
    %247 = vmatpush.msra.mxu0 0.0
    %248 = vmatpush.msra.mxu0 0.0
    %249 = vmatpush.msra.mxu0 0.0
    %250 = vmatpush.msra.mxu0 0.0
    %251 = vmatpush.msra.mxu0 0.0
    %252 = vmatpush.msra.mxu0 %v239
    %253 = vmatpush.msra.mxu0 %v238
    %254 = vmatpush.msra.mxu0 %v237
    %255 = vmatpush.msra.mxu0 %v236
    %256 = vmatmul.f32.gmra.mxu0 %v171
    %v257 = vpop.f32.mrf.mxu0
    %v258 = vadd.f32 0.0, %v257
    %259 = vdwg.mxu0
    %v261 = vsel %vm70, %v231, 0
    %263 = vmatpush.msra.mxu0 0.0
    %264 = vmatpush.msra.mxu0 0.0
    %265 = vmatpush.msra.mxu0 0.0
    %266 = vmatpush.msra.mxu0 0.0
    %267 = vmatpush.msra.mxu0 0.0
    %268 = vmatpush.msra.mxu0 0.0
    %269 = vmatpush.msra.mxu0 0.0
    %270 = vmatpush.msra.mxu0 0.0
    %271 = vmatpush.msra.mxu0 0.0
    %272 = vmatpush.msra.mxu0 0.0
    %273 = vmatpush.msra.mxu0 0.0
    %274 = vmatpush.msra.mxu0 0.0
    %275 = vmatpush.msra.mxu0 %v235
    %276 = vmatpush.msra.mxu0 %v234
    %277 = vmatpush.msra.mxu0 %v233
    %278 = vmatpush.msra.mxu0 %v232
    %279 = vmatmul.f32.gmra.mxu0 %v261
    %v280 = vpop.f32.mrf.mxu0
    %v281 = vadd.f32 %v258, %v280
    %282 = vdwg.mxu0
    %v283 = vld [vmem:[%s7 + $0x40] sm:$0xff]
    %v284 = vld [vmem:[%s7 + $0x48] sm:$0xff]
    %v285 = vld [vmem:[%s7 + $0x50] sm:$0xff]
    %v286 = vld [vmem:[%s7 + $0x58] sm:$0xff]
    %287 = vmatpush.msra.mxu0 0.0
    %288 = vmatpush.msra.mxu0 0.0
    %289 = vmatpush.msra.mxu0 0.0
    %290 = vmatpush.msra.mxu0 0.0
    %291 = vmatpush.msra.mxu0 0.0
    %292 = vmatpush.msra.mxu0 0.0
    %293 = vmatpush.msra.mxu0 0.0
    %294 = vmatpush.msra.mxu0 0.0
    %295 = vmatpush.msra.mxu0 0.0
    %296 = vmatpush.msra.mxu0 0.0
    %297 = vmatpush.msra.mxu0 0.0
    %298 = vmatpush.msra.mxu0 0.0
    %299 = vmatpush.msra.mxu0 %v286
    %300 = vmatpush.msra.mxu0 %v285
    %301 = vmatpush.msra.mxu0 %v284
    %302 = vmatpush.msra.mxu0 %v283
    %303 = vmatmul.f32.gmra.mxu0 %v72
    %v304 = vpop.f32.mrf.mxu0
    %v305 = vadd.f32 0.0, %v304
    %306 = vdwg.mxu0
    %v307 = vadd.f32 %v281, %v305
    %v308 = vld [vmem:[%s8] sm:$0x1]
    %v310 = vperm.slane %v308, 0
    %v312 = vadd.f32 %v307, %v310
    %313 = vst [vmem:[#allocation7] sm:$0xff] %v312
    // Predicated region
    $region46: #{generator_forward.1} parent=1 // pred_check
      _
    $region47: #{generator_forward.1} parent=1 // pred_check_branch
      %315 = sbr.rel (0) target = $region49
    $region48: #{generator_forward.1} parent=1 // pred_region
      %317 = vsyncadd [#allocation4], 0
      %s319 = sshll.u32 [#allocation7], 4
      %s320 = int_to_ptr.vmem [resolvable:$true] %s319
      %s321 = sshll.u32 %s9, 4
      %s322 = int_to_ptr.hbm [resolvable:$true] %s321
      %324 = dma.vmem_to_hbm [thread:$0]  %s320, 128, %s322, [#allocation4]
    $region49: #{generator_forward.1} parent=1 // pred_fallthru
      _
    // Predicated region
    $region50: #{generator_forward.1} parent=1 // pred_check
      _
    $region51: #{generator_forward.1} parent=1 // pred_check_branch
      %326 = sbr.rel (0) target = $region53
    $region52: #{generator_forward.1} parent=1 // pred_region
      %328 = dma.done [#allocation4], 128
    $region53: #{generator_forward.1} parent=1 // pred_fallthru
      _
    %329 = vsyncpa [#allocation3], 1
    %330 = vsyncpa [#allocation6], 1
    %331 = vsyncpa [#allocation4], 1

</llo_original>
